<compile_context>
chip_gen: v7x
topology: tpu7x:2x2x1
jax: 0.10.0
libtpu: 0.0.40
codegen_flags: <defaults>
</compile_context>

<pallas_src>
import functools

import jax
import jax.numpy as jnp
from jax.experimental import pallas as pl
from jax.experimental.pallas import tpu as pltpu


# ---------------------------------------------------------------------------
# Kernels
# ---------------------------------------------------------------------------
def _linear_kernel_acc(x_ref, w_ref, b_ref, o_ref, acc_ref):
    """Multi-step reduction over K with an f32 VMEM accumulator."""
    k = pl.program_id(2)

    @pl.when(k == 0)
    def _():
        acc_ref[...] = jnp.zeros_like(acc_ref)

    acc_ref[...] += jnp.dot(
        x_ref[...], w_ref[...], preferred_element_type=jnp.float32
    )

    @pl.when(k == pl.num_programs(2) - 1)
    def _():
        # Bias added exactly once, on finalize; b_ref is (1, tn) and
        # broadcasts over the tm rows. Cast only at the final store.
        o_ref[...] = (acc_ref[...] + b_ref[...]).astype(o_ref.dtype)


def _linear_kernel_single_k(x_ref, w_ref, b_ref, o_ref):
    """K fits in one tile: no scratch accumulator, no init/finalize branches."""
    o_ref[...] = (
        jnp.dot(x_ref[...], w_ref[...], preferred_element_type=jnp.float32)
        + b_ref[...]
    ).astype(o_ref.dtype)


# ---------------------------------------------------------------------------
# Host-side helpers
# ---------------------------------------------------------------------------
def _round_up(x, m):
    return (x + m - 1) // m * m


def _tpu_generation():
    try:
        kind = jax.devices()[0].device_kind.lower()
    except Exception:  # pragma: no cover - defensive only
        return "unknown"
    if "v5 lite" in kind or "v5lite" in kind or "v5e" in kind:
        return "v5e"
    if "v6" in kind:
        return "v6e"
    if "v7" in kind:
        return "v7x"
    return "unknown"


def _default_tiles():
    """(tm, tn, tk, vmem_limit_bytes) tuned per TPU generation."""
    gen = _tpu_generation()
    if gen == "v5e":
        # 197 TF/s vs ~0.82 TB/s: 512-square tiles already compute-bound.
        # Scoped VMEM default is only 16 MiB -> raise it.
        return 512, 512, 512, 96 * 1024 * 1024
    if gen == "v6e":
        # 918 TF/s vs ~1.4 TB/s: needs ~1024-square tiles; 128 MiB physical.
        return 1024, 1024, 1024, 100 * 1024 * 1024
    if gen == "v7x":
        # 64 MiB/TC physical VMEM: big tiles, but leave compiler headroom.
        return 1024, 1024, 512, 48 * 1024 * 1024
    # Unknown chip: conservative tiles, keep compiler's default VMEM limit.
    return 512, 512, 512, None


def _pad_cast(a, shape, dtype):
    """Cast + zero-pad only when actually needed (no copy for aligned input)."""
    a = a.astype(dtype)  # no-op if already `dtype`
    if a.shape == tuple(shape):
        return a
    pads = [(0, t - s) for s, t in zip(a.shape, shape)]
    return jnp.pad(a, pads)


# ---------------------------------------------------------------------------
# Public entry point
# ---------------------------------------------------------------------------
@functools.partial(jax.jit, static_argnames=("tm", "tn", "tk"))
def linear(x, W, b, *, tm=None, tn=None, tk=None):
    """y = x @ W + b via a tiled Pallas matmul kernel.

    x: [M, K], W: [K, N], b: [N]. Returns [M, N] in x.dtype.
    Works for arbitrary shapes by padding up to tile multiples when needed.
    """
    M, K = x.shape
    K2, N = W.shape
    assert K == K2, (K, K2)
    out_dtype = x.dtype

    dtm, dtn, dtk, vmem_limit = _default_tiles()
    tm = dtm if tm is None else tm
    tn = dtn if tn is None else tn
    tk = dtk if tk is None else tk

    # Clamp tile sizes for small problems, keeping TPU-friendly alignment:
    # tm multiple of 16 (bf16 sublane packing), tn/tk multiples of 128 (lane).
    tm = min(tm, _round_up(M, 16))
    tn = min(tn, _round_up(N, 128))
    tk = min(tk, _round_up(K, 128))

    # Small-K (and the dominant small-M inference) case: collapse the K grid
    # to a single step so x is fetched once, W is streamed exactly once, and
    # the accumulator read-modify-write disappears. Only when the x tile and
    # W tile comfortably fit VMEM.
    Kp_full = _round_up(K, 128)
    if Kp_full <= 2048 and Kp_full * tm * 2 <= 8 * 1024 * 1024:
        tk = Kp_full

    Mp = _round_up(M, tm)
    Kp = _round_up(K, tk)
    Np = _round_up(N, tn)

    # Cast MXU operands to bf16 (f32 accumulation inside the kernel) and pad
    # up to the tile grid only if needed. Zero padding along K is exact.
    x_p = _pad_cast(x, (Mp, Kp), jnp.bfloat16)
    w_p = _pad_cast(W, (Kp, Np), jnp.bfloat16)
    b_p = _pad_cast(b.reshape(1, N), (1, Np), jnp.float32)

    gm, gn, gk = Mp // tm, Np // tn, Kp // tk
    single_k = gk == 1

    # When the N grid dominates (small-M decode shapes), make N the leading
    # grid axis so megacore sharding (v7x) splits the W stream across cores
    # instead of duplicating it. K stays last ("arbitrary" reduction axis).
    n_major = gn > gm
    if n_major:
        grid = (gn, gm, gk)
        x_map = lambda j, i, k: (i, k)
        w_map = lambda j, i, k: (k, j)
        b_map = lambda j, i, k: (0, j)
        o_map = lambda j, i, k: (i, j)
    else:
        grid = (gm, gn, gk)
        x_map = lambda i, j, k: (i, k)
        w_map = lambda i, j, k: (k, j)
        b_map = lambda i, j, k: (0, j)
        o_map = lambda i, j, k: (i, j)

    if single_k:
        kernel = _linear_kernel_single_k
        scratch_shapes = []
    else:
        kernel = _linear_kernel_acc
        scratch_shapes = [pltpu.VMEM((tm, tn), jnp.float32)]

    out_p = pl.pallas_call(
        kernel,
        out_shape=jax.ShapeDtypeStruct((Mp, Np), out_dtype),
        grid_spec=pltpu.PrefetchScalarGridSpec(
            num_scalar_prefetch=0,
            grid=grid,
            in_specs=[
                pl.BlockSpec((tm, tk), x_map),   # x tile
                pl.BlockSpec((tk, tn), w_map),   # W tile
                pl.BlockSpec((1, tn), b_map),    # bias tile
            ],
            out_specs=pl.BlockSpec((tm, tn), o_map),
            scratch_shapes=scratch_shapes,
        ),
        compiler_params=pltpu.CompilerParams(
            dimension_semantics=("parallel", "parallel", "arbitrary"),
            vmem_limit_bytes=vmem_limit,
        ),
    )(x_p, w_p, b_p)

    if (Mp, Np) != (M, N):
        out_p = out_p[:M, :N]
    return out_p


# ---------------------------------------------------------------------------
# Demo / self-test
# ---------------------------------------------------------------------------
if __name__ == "__main__":
    key = jax.random.PRNGKey(0)
    k_x, k_w, k_b = jax.random.split(key, 3)

    # Small shapes consistent with a generic Linear layer:
    # seq=8 tokens, hidden_in=32, hidden_out=64. Exercises the single-K path.
    M, K, N = 8, 32, 64
    x = jax.random.normal(k_x, (M, K), dtype=jnp.float32)
    W = jax.random.normal(k_w, (K, N), dtype=jnp.float32) * 0.1
    b = jax.random.normal(k_b, (N,), dtype=jnp.float32) * 0.1

    y = linear(x, W, b)
    y = jax.block_until_ready(y)
    assert y.shape == (M, N)

    # Tight check vs the same-precision (bf16 inputs, f32 accum) reference.
    y_bf16_ref = (
        jnp.dot(x.astype(jnp.bfloat16), W.astype(jnp.bfloat16),
                preferred_element_type=jnp.float32)
        + b.astype(jnp.float32)
    ).astype(jnp.float32)
    assert jnp.allclose(y, y_bf16_ref, atol=1e-5, rtol=1e-5), \
        "mismatch vs bf16-input reference (single-K path)"

    # Loose check vs the full-f32 reference (bf16 input rounding only).
    y_f32_ref = x @ W + b
    assert jnp.allclose(y, y_f32_ref, atol=2e-2, rtol=2e-2), \
        "mismatch vs f32 reference (single-K path)"

    # Second (still modest) shape to exercise the multi-K accumulator path.
    k_x2, k_w2, k_b2 = jax.random.split(jax.random.PRNGKey(1), 3)
    M2, K2, N2 = 128, 4096, 256
    x2 = jax.random.normal(k_x2, (M2, K2), dtype=jnp.float32)
    W2 = jax.random.normal(k_w2, (K2, N2), dtype=jnp.float32) * 0.05
    b2 = jax.random.normal(k_b2, (N2,), dtype=jnp.float32) * 0.1

    y2 = jax.block_until_ready(linear(x2, W2, b2))
    y2_ref = (
        jnp.dot(x2.astype(jnp.bfloat16), W2.astype(jnp.bfloat16),
                preferred_element_type=jnp.float32)
        + b2.astype(jnp.float32)
    ).astype(jnp.float32)
    assert y2.shape == (M2, N2)
    assert jnp.allclose(y2, y2_ref, atol=1e-4, rtol=1e-4), \
        "mismatch vs bf16-input reference (multi-K path)"

    print("KERNEL_OK")
</pallas_src>

<mosaic_0001>
module attributes {stable_mosaic.version = 11 : i64} {
  func.func @_linear_kernel_single_k(%arg0: i32, %arg1: i32, %arg2: i32, %arg3: memref<16x128xbf16, #tpu.memory_space<vmem>>, %arg4: memref<128x128xbf16, #tpu.memory_space<vmem>>, %arg5: memref<1x128xf32, #tpu.memory_space<vmem>>, %arg6: memref<16x128xf32, #tpu.memory_space<vmem>>) attributes {dimension_semantics = [#tpu.dimension_semantics<parallel>, #tpu.dimension_semantics<parallel>, #tpu.dimension_semantics<arbitrary>], iteration_bounds = array<i64: 1, 1, 1>, scalar_prefetch = 0 : i64, scratch_operands = 0 : i64, tpu.core_type = #tpu.core_type<tc>, window_params = [{transform_indices = @transform_0, window_bounds = array<i64: 16, 128>}, {transform_indices = @transform_1, window_bounds = array<i64: 128, 128>}, {transform_indices = @transform_2, window_bounds = array<i64: 1, 128>}, {transform_indices = @transform_3, window_bounds = array<i64: 16, 128>}]} {
    %c0 = arith.constant 0 : index
    %c0_0 = arith.constant 0 : index
    %0 = vector.load %arg3[%c0, %c0_0] : memref<16x128xbf16, #tpu.memory_space<vmem>>, vector<16x128xbf16>
    %c0_1 = arith.constant 0 : index
    %c0_2 = arith.constant 0 : index
    %1 = vector.load %arg4[%c0_1, %c0_2] : memref<128x128xbf16, #tpu.memory_space<vmem>>, vector<128x128xbf16>
    %cst = arith.constant dense<0.000000e+00> : vector<16x128xf32>
    %2 = tpu.matmul %0, %1, %cst {dimension_numbers = #tpu.dot_dimension_numbers<[1], [0], [0], [1], [0, 0, 1, 1], [], []>} : vector<16x128xbf16>, vector<128x128xbf16>, vector<16x128xf32> -> vector<16x128xf32>
    %c0_3 = arith.constant 0 : index
    %c0_4 = arith.constant 0 : index
    %3 = vector.load %arg5[%c0_3, %c0_4] : memref<1x128xf32, #tpu.memory_space<vmem>>, vector<1x128xf32>
    %4 = vector.broadcast %3 : vector<1x128xf32> to vector<16x128xf32>
    %5 = arith.addf %2, %4 : vector<16x128xf32>
    %c0_5 = arith.constant 0 : index
    %c0_6 = arith.constant 0 : index
    %6 = vector.load %arg6[%c0_5, %c0_6] : memref<16x128xf32, #tpu.memory_space<vmem>>, vector<16x128xf32>
    tpu.vector_store %arg6[%c0_5, %c0_6], %5 {strides = array<i32>} : memref<16x128xf32, #tpu.memory_space<vmem>>, vector<16x128xf32>,
    return
  }
  func.func @transform_0(%arg0: i32, %arg1: i32, %arg2: i32) -> (i32, i32) {
    %c0_i32 = arith.constant 0 : i32
    return %arg0, %arg2 : i32, i32
  }
  func.func @transform_1(%arg0: i32, %arg1: i32, %arg2: i32) -> (i32, i32) {
    %c0_i32 = arith.constant 0 : i32
    return %arg2, %arg1 : i32, i32
  }
  func.func @transform_2(%arg0: i32, %arg1: i32, %arg2: i32) -> (i32, i32) {
    %c0_i32 = arith.constant 0 : i32
    %c0_i32_0 = arith.constant 0 : i32
    return %c0_i32, %arg1 : i32, i32
  }
  func.func @transform_3(%arg0: i32, %arg1: i32, %arg2: i32) -> (i32, i32) {
    %c0_i32 = arith.constant 0 : i32
    return %arg0, %arg1 : i32, i32
  }
}

</mosaic_0001>

<llo_original>
// kernel: linear.1
$region0: #{linear.1}
  #allocation0 [shape = 'u32[]', space=smem, size = 0x4, offset = 0x4, fixed_abs, tag = 'smem constant byte address 0x4 - core index']
  #allocation1 [shape = 'u32[144,128]{1,0:T(1,128)}', space=vmem, size = 0x12000, scoped, tag = 'internal scratch']
  %s0 = inlined_call_operand.vmem [shape: bf16[16,128], index: 0, kind: input, shape index: {}]
  %s1 = inlined_call_operand.vmem [shape: bf16[128,128], index: 1, kind: input, shape index: {}]
  %s2 = inlined_call_operand.vmem [shape: f32[1,128], index: 2, kind: input, shape index: {}]
  %s3 = inlined_call_operand.vmem [shape: f32[16,128], index: 3, kind: output, shape index: {}]
  %s4 = sld [smem:[#allocation0]]
  $region22: #{linear.1} parent=0
    _
  %s6 = ssub.s32 1, %s4
  %s7 = scalar_select 0, %s6, %s4
  // Predicated region
  $region2: #{linear.1} parent=0 // pred_check
    _
  $region3: #{linear.1} parent=0 // pred_check_branch
    %9 = sbr.rel (0) target = $region5
  $region4: #{linear.1} parent=0 // pred_region
    _
  $region5: #{linear.1} parent=0 // pred_fallthru
    _
  // Predicated region
  $region6: #{linear.1} parent=0 // pred_check
    _
  $region7: #{linear.1} parent=0 // pred_check_branch
    %11 = sbr.rel (0) target = $region9
  $region8: #{linear.1} parent=0 // pred_region
    _
  $region9: #{linear.1} parent=0 // pred_fallthru
    _
  // Predicated region
  $region10: #{linear.1} parent=0 // pred_check
    _
  $region11: #{linear.1} parent=0 // pred_check_branch
    %13 = sbr.rel (0) target = $region13
  $region12: #{linear.1} parent=0 // pred_region
    _
  $region13: #{linear.1} parent=0 // pred_fallthru
    _
  %v15 = vld [vmem:[%s0] sm:$0xf]
  %v16 = vld [vmem:[%s0 + $0x4] sm:$0xf]
  %v17 = vld [vmem:[%s1] sm:$0xf]
  %v18 = vld [vmem:[%s1 + $0x4] sm:$0xf]
  %v19 = vld [vmem:[%s1 + $0x8] sm:$0xf]
  %v20 = vld [vmem:[%s1 + $0xc] sm:$0xf]
  %v21 = vld [vmem:[%s1 + $0x10] sm:$0xf]
  %v22 = vld [vmem:[%s1 + $0x14] sm:$0xf]
  %v23 = vld [vmem:[%s1 + $0x18] sm:$0xf]
  %v24 = vld [vmem:[%s1 + $0x1c] sm:$0xf]
  %v25 = vld [vmem:[%s1 + $0x20] sm:$0xf]
  %v26 = vld [vmem:[%s1 + $0x24] sm:$0xf]
  %v27 = vld [vmem:[%s1 + $0x28] sm:$0xf]
  %v28 = vld [vmem:[%s1 + $0x2c] sm:$0xf]
  %v29 = vld [vmem:[%s1 + $0x30] sm:$0xf]
  %v30 = vld [vmem:[%s1 + $0x34] sm:$0xf]
  %v31 = vld [vmem:[%s1 + $0x38] sm:$0xf]
  %v32 = vld [vmem:[%s1 + $0x3c] sm:$0xf]
  %v33 = vld [vmem:[%s2] sm:$0x1]
  %v35 = vlaneseq
  %v36 = vshrl.u32 %v35, 7
  %v37 = vsub.s32 0, %v36
  %v38 = vrot.slane %v33, %v37
  %v42 = vunpack.c.l.b16 %v15
  %v43 = vunpack.c.l.b16 %v16
  %v44 = vpack.c.b16 %v43, %v42
  %v62 = vunpack.c.l.b16 %v17
  %v63 = vunpack.c.l.b16 %v18
  %v64 = vunpack.c.l.b16 %v19
  %v65 = vunpack.c.l.b16 %v20
  %v66 = vunpack.c.l.b16 %v21
  %v67 = vunpack.c.l.b16 %v22
  %v68 = vunpack.c.l.b16 %v23
  %v69 = vunpack.c.l.b16 %v24
  %v70 = vunpack.c.l.b16 %v25
  %v71 = vunpack.c.l.b16 %v26
  %v72 = vunpack.c.l.b16 %v27
  %v73 = vunpack.c.l.b16 %v28
  %v74 = vunpack.c.l.b16 %v29
  %v75 = vunpack.c.l.b16 %v30
  %v76 = vunpack.c.l.b16 %v31
  %v77 = vunpack.c.l.b16 %v32
  %v78 = vpack.c.b16 %v63, %v62
  %v79 = vpack.c.b16 %v65, %v64
  %v80 = vpack.c.b16 %v67, %v66
  %v81 = vpack.c.b16 %v69, %v68
  %v82 = vpack.c.b16 %v71, %v70
  %v83 = vpack.c.b16 %v73, %v72
  %v84 = vpack.c.b16 %v75, %v74
  %v85 = vpack.c.b16 %v77, %v76
  %94 = vmatprep.subr.bf16.mxu0 0
  %95 = vmatpush1.bf16.msra.mxu0 %v78
  %96 = vmatprep.subr.bf16.mxu0 0
  %97 = vmatpush1.bf16.msra.mxu0 %v79
  %98 = vmatprep.subr.bf16.mxu0 0
  %99 = vmatpush1.bf16.msra.mxu0 %v80
  %100 = vmatprep.subr.bf16.mxu0 0
  %101 = vmatpush1.bf16.msra.mxu0 %v81
  %102 = vmatprep.subr.bf16.mxu0 0
  %103 = vmatpush1.bf16.msra.mxu0 %v82
  %104 = vmatprep.subr.bf16.mxu0 0
  %105 = vmatpush1.bf16.msra.mxu0 %v83
  %106 = vmatprep.subr.bf16.mxu0 0
  %107 = vmatpush1.bf16.msra.mxu0 %v84
  %108 = vmatprep.subr.bf16.mxu0 0
  %109 = vmatpush1.bf16.msra.mxu0 %v85
  %110 = vmatprep.subr.bf16.mxu0 0
  %111 = vmatpush1.bf16.msra.mxu0 0
  %112 = vmatprep.subr.bf16.mxu0 0
  %113 = vmatpush1.bf16.msra.mxu0 0
  %114 = vmatprep.subr.bf16.mxu0 0
  %115 = vmatpush1.bf16.msra.mxu0 0
  %116 = vmatprep.subr.bf16.mxu0 0
  %117 = vmatpush1.bf16.msra.mxu0 0
  %118 = vmatprep.subr.bf16.mxu0 0
  %119 = vmatpush1.bf16.msra.mxu0 0
  %120 = vmatprep.subr.bf16.mxu0 0
  %121 = vmatpush1.bf16.msra.mxu0 0
  %122 = vmatprep.subr.bf16.mxu0 0
  %123 = vmatpush1.bf16.msra.mxu0 0
  %124 = vmatprep.subr.bf16.mxu0 0
  %125 = vmatpush1.bf16.msra.mxu0 0
  %126 = vmatprep.mubr.bf16.mxu0 0
  %127 = vmatmul.mubr.bf16.gmra.mrb[0].mxu0 %v44
  %v128 = vpop.f32.mrb[0].mxu0
  %v129 = vadd.f32 %v38, %v128
  %v130 = vpop.f32.mrb[0].mxu0
  %v131 = vpop.f32.mrb[0].mxu0
  %v132 = vadd.f32 %v38, %v131
  %v133 = vpop.f32.mrb[0].mxu0
  %134 = vdwg.mxu0
  %135 = vst [vmem:[%s3] sm:$0xff] %v129
  %136 = vst [vmem:[%s3 + $0x8] sm:$0xff] %v132
  // Predicated region
  $region14: #{linear.1} parent=0 // pred_check
    _
  $region15: #{linear.1} parent=0 // pred_check_branch
    %138 = sbr.rel (0) target = $region17
  $region16: #{linear.1} parent=0 // pred_region
    _
  $region17: #{linear.1} parent=0 // pred_fallthru
    _
  // Predicated region
  $region18: #{linear.1} parent=0 // pred_check
    _
  $region19: #{linear.1} parent=0 // pred_check_branch
    %140 = sbr.rel (0) target = $region21
  $region20: #{linear.1} parent=0 // pred_region
    _
  $region21: #{linear.1} parent=0 // pred_fallthru
    _

</llo_original>
